<compile_context>
chip_gen: v5e
topology: v5e:2x2
jax: 0.10.0
libtpu: 0.0.40
codegen_flags: <defaults>
</compile_context>

<pallas_src>
import functools

import jax
import jax.numpy as jnp
import numpy as np
from jax.experimental import pallas as pl
from jax.experimental.pallas import tpu as pltpu


@functools.lru_cache(maxsize=None)
def _roll_is_np_convention() -> bool:
    """Pin down pltpu.roll's rotation direction with a tiny one-off probe kernel."""
    def probe(x_ref, o_ref):
        o_ref[...] = pltpu.roll(x_ref[...], 1, 1)

    x = jnp.broadcast_to(jnp.arange(128, dtype=jnp.float32), (8, 128))
    y = pl.pallas_call(probe, out_shape=jax.ShapeDtypeStruct((8, 128), jnp.float32))(x)
    v = float(jax.device_get(y)[0, 0])
    if v == 127.0:       # np.roll semantics: out[i] = x[(i - shift) % n]
        return True
    if v == 1.0:         # opposite convention: out[i] = x[(i + shift) % n]
        return False
    raise RuntimeError(f"unexpected pltpu.roll probe value: {v}")


def _choose_batch_block(N, L, max_lanes=512):
    """How many batch elements to pack onto the lane axis per grid step."""
    divisors = [d for d in range(1, N + 1) if N % d == 0]
    # prefer lane widths that are a multiple of 128 (full vreg rows, aligned rolls)
    pool = [d for d in divisors if (d * L) % 128 == 0] or divisors
    # cap lane width so the stage-2 accumulator stays comfortably inside 64 vregs
    pool = [d for d in pool if d * L <= max_lanes] or [pool[0]]
    # keep >=2 grid steps when possible so v7x's two TensorCores both get work
    multi = [d for d in pool if N // d >= 2]
    return max(multi or pool)


def _fused_head_kernel(x_ref, w1_ref, b1_ref, w2_ref, b2_ref, o_ref, *,
                       K, H, W, NB, Cin, C1, C2, offsets, roll_like_np):
    """One grid step = NB batch elements packed along the lane axis.

    x_ref : (Cin, NB*L)           f32 VMEM   lanes ordered [nb][i*W + j]
    w1_ref: (K*K*Cin, C1, 1)      f32 VMEM   per-(tap, ci) output-channel column
    b1_ref: (C1, 1)               f32 VMEM
    w2_ref: (n_off*C1, 4*C2, 1)   f32 VMEM   per-(offset, ci) column over rows co*4+phase
    b2_ref: (4*C2, 1)             f32 VMEM
    o_ref : (4*C2, NB*L)          f32 VMEM   rows ordered [co][2*ph + pw]
    """
    L = H * W
    NBL = NB * L
    p = K // 2

    x = x_ref[...]                                     # (Cin, NBL)

    # -- per-(H,W)-block boundary index fields (batch blocks repeat every L lanes) --
    pos = jax.lax.broadcasted_iota(jnp.int32, (1, NBL), 1)
    loc = pos - (pos // L) * L
    row = loc // W
    col = loc - row * W

    mask_cache = {}

    def bmask(dh, dw):
        key = (dh, dw)
        if key not in mask_cache:
            m = None
            if dh != 0:
                m = (row + dh >= 0) & (row + dh < H)
            if dw != 0:
                mw = (col + dw >= 0) & (col + dw < W)
                m = mw if m is None else (m & mw)
            mask_cache[key] = m
        return mask_cache[key]

    def shifted(a, dh, dw):
        """`a` advanced by (dh, dw) on every (H, W) block; out-of-range -> 0.

        One lane rotation + one mask per unique tap, shared by every channel pair.
        Any lane the rotation drags across a row / block / batch boundary is exactly
        a lane the boundary mask zeroes, so packing batches on the lane axis is safe.
        """
        off = (dh * W + dw) % NBL
        if off == 0:
            s = a
        elif NBL % 128 == 0:
            s = pltpu.roll(a, ((-off) % NBL) if roll_like_np else off, 1)
        else:  # unaligned lane widths (e.g. N==1, L==64): static two-slice rotate
            s = jnp.concatenate([a[:, off:], a[:, :off]], axis=1)
        m = bmask(dh, dw)
        return s if m is None else jnp.where(m, s, 0.0)

    # ---- stage 1: Conv3d(K, padding=K//2).  D == 1 => only the centre depth tap. ----
    acc1 = jnp.zeros((C1, NBL), jnp.float32)
    for kh in range(K):
        for kw in range(K):
            sh = shifted(x, kh - p, kw - p)            # (Cin, NBL): one shift per tap
            t = kh * K + kw
            for ci in range(Cin):
                acc1 = acc1 + sh[ci:ci + 1, :] * w1_ref[t * Cin + ci]
    y1 = acc1 + b1_ref[...]                            # bias folded once; stays on-chip

    # ---- stage 2: ConvTranspose3d(K, stride=2, pad=K//2) via 2x2 phase decomposition ----
    # acc2[co*4 + (2*ph+pw), nb*L + i*W + j] = o[nb, co, 2i+ph, 2j+pw] - b2[co]
    acc2 = jnp.zeros((4 * C2, NBL), jnp.float32)
    for oi, (dh, dw) in enumerate(offsets):
        sh = shifted(y1, dh, dw)                       # (C1, NBL): one shift per offset
        for ci in range(C1):
            acc2 = acc2 + sh[ci:ci + 1, :] * w2_ref[oi * C1 + ci]
    o_ref[...] = acc2 + b2_ref[...]                    # single full-block lane-dense store


def init_params(key, in_channels, out_channels, k=3):
    """Deterministic PyTorch-default-style (uniform) init."""
    k1, k2, k3, k4 = jax.random.split(key, 4)
    bnd1 = 1.0 / np.sqrt(in_channels * k ** 3)
    w1 = jax.random.uniform(k1, (out_channels, in_channels, k, k, k), jnp.float32, -bnd1, bnd1)
    b1 = jax.random.uniform(k2, (out_channels,), jnp.float32, -bnd1, bnd1)
    bnd2 = 1.0 / np.sqrt(out_channels * k ** 3)
    # ConvTranspose3d weight layout: (in_channels=out_channels, out_channels, k, k, k)
    w2 = jax.random.uniform(k3, (out_channels, out_channels, k, k, k), jnp.float32, -bnd2, bnd2)
    b2 = jax.random.uniform(k4, (out_channels,), jnp.float32, -bnd2, bnd2)
    return dict(w1=w1, b1=b1, w2=w2, b2=b2)


def segmentation_head_transpose3d_2(x, params, kernel_size=3):
    """Forward pass.  x: (N, C_in, D, H, W) float32, NCDHW (PyTorch)."""
    K = kernel_size
    if K % 2 != 1:
        raise ValueError("kernel_size must be odd (module uses padding = kernel_size // 2)")
    p = K // 2
    stride = 2
    N, Cin, D, H, W = x.shape
    C1 = params["w1"].shape[0]
    C2 = params["w2"].shape[1]
    if params["w2"].shape[0] != C1:
        raise ValueError("conv / transpose-conv channel mismatch")

    # torch ConvTranspose3d output_size check; target spatial = (D, 2H, 2W).
    # (Unchanged depth with stride 2 is only reachable when D == 1 — same ValueError
    #  PyTorch would raise otherwise.)
    target = (D, 2 * H, 2 * W)
    min_sizes = tuple((s - 1) * stride - 2 * p + K for s in (D, H, W))
    for t_, m_ in zip(target, min_sizes):
        if not (0 <= t_ - m_ < stride):
            raise ValueError(
                f"requested output size {target} unreachable from input {(D, H, W)} "
                f"(min {min_sizes}, stride {stride})")

    L = H * W
    NB = _choose_batch_block(N, L)
    G = N // NB
    NBL = NB * L

    # ---- pack NB batch elements per block onto the lane axis: (G, Cin, NB*L) ----
    x_flat = x.reshape(N, Cin, L).astype(jnp.float32)
    x_packed = x_flat.reshape(G, NB, Cin, L).transpose(0, 2, 1, 3).reshape(G, Cin, NBL)

    # ---- stage-1 weight columns: row (kh*K + kw)*Cin + ci  ->  (C1, 1) over co ----
    w1c = params["w1"][:, :, p, :, :].astype(jnp.float32)          # D == 1 -> kd == p only
    w1_cols = jnp.transpose(w1c, (2, 3, 1, 0)).reshape(K * K * Cin, C1)[..., None]
    b1_col = params["b1"].astype(jnp.float32)[:, None]             # (C1, 1)

    # ---- stage-2: enumerate phase/tap groups of the 2x2 sub-pixel decomposition ----
    tap_groups = {}
    for ph in range(2):
        for pw_ in range(2):
            for kh in range(K):
                if (ph + p - kh) % 2:
                    continue
                dh = (ph + p - kh) // 2
                for kw in range(K):
                    if (pw_ + p - kw) % 2:
                        continue
                    dw = (pw_ + p - kw) // 2
                    tap_groups.setdefault((dh, dw), []).append((2 * ph + pw_, kh, kw))
    offsets = tuple(sorted(tap_groups))

    # dense per-(offset, ci) columns over rows co*4 + phase (zeros where no tap maps)
    rows, cols, gci, gco, gkh, gkw = [], [], [], [], [], []
    for oi, od in enumerate(offsets):
        for (phase, kh, kw) in tap_groups[od]:
            for ci in range(C1):
                for co in range(C2):
                    rows.append(oi * C1 + ci)
                    cols.append(co * 4 + phase)
                    gci.append(ci); gco.append(co); gkh.append(kh); gkw.append(kw)
    vals = params["w2"].astype(jnp.float32)[np.array(gci), np.array(gco), p,
                                            np.array(gkh), np.array(gkw)]
    w2_cols = (jnp.zeros((len(offsets) * C1, 4 * C2), jnp.float32)
               .at[np.array(rows), np.array(cols)].set(vals))[..., None]
    b2_col = jnp.repeat(params["b2"].astype(jnp.float32), 4)[:, None]   # (4*C2, 1)

    kern = functools.partial(
        _fused_head_kernel, K=K, H=H, W=W, NB=NB, Cin=Cin, C1=C1, C2=C2,
        offsets=offsets, roll_like_np=_roll_is_np_convention())

    out_flat = pl.pallas_call(
        kern,
        grid=(G,),
        out_shape=jax.ShapeDtypeStruct((G, 4 * C2, NBL), jnp.float32),
        in_specs=[
            pl.BlockSpec((None, Cin, NBL), lambda g: (g, 0, 0)),
            pl.BlockSpec((K * K * Cin, C1, 1), lambda g: (0, 0, 0)),
            pl.BlockSpec((C1, 1), lambda g: (0, 0)),
            pl.BlockSpec((len(offsets) * C1, 4 * C2, 1), lambda g: (0, 0, 0)),
            pl.BlockSpec((4 * C2, 1), lambda g: (0, 0)),
        ],
        out_specs=pl.BlockSpec((None, 4 * C2, NBL), lambda g: (g, 0, 0)),
        compiler_params=pltpu.CompilerParams(
            dimension_semantics=("parallel",),          # v7x: 2 TCs split the batch blocks
            vmem_limit_bytes=32 * 1024 * 1024),
    )(x_packed, w1_cols, b1_col, w2_cols, b2_col)

    # ---- un-pack: (G, [co, ph, pw], [nb, i, j]) -> (N, C2, D=1, 2H, 2W) ----
    # NOTE: for deployment shapes with L >= ~512, add an inner lane-chunk loop so the
    # (4*C2, NBL) accumulator stays in the 64-vreg file (not needed at these sizes).
    out = (out_flat.reshape(G, C2, 2, 2, NB, H, W)
           .transpose(0, 4, 1, 5, 2, 6, 3)
           .reshape(N, C2, 2 * H, 2 * W)
           .reshape(N, C2, D, 2 * H, 2 * W))            # Activation(None) -> Identity
    return out


if __name__ == "__main__":
    key = jax.random.PRNGKey(0)
    kx, kp = jax.random.split(key)
    # Depth must be 1: the PyTorch module requests an output_size with an UNCHANGED
    # depth, which a stride-2 ConvTranspose3d can only satisfy when D == 1.
    N, Cin, Cout, D, H, W = 2, 4, 3, 1, 8, 8
    x = jax.random.normal(kx, (N, Cin, D, H, W), jnp.float32)
    params = init_params(kp, Cin, Cout)

    out = segmentation_head_transpose3d_2(x, params)
    out = jax.block_until_ready(out)
    assert out.shape == (N, Cout, D, 2 * H, 2 * W), out.shape

    # sanity check against lax convolutions (same math as the torch module)
    dn = ("NCDHW", "OIDHW", "NCDHW")
    ref1 = jax.lax.conv_general_dilated(
        x, params["w1"], (1, 1, 1), [(1, 1)] * 3, dimension_numbers=dn,
        precision=jax.lax.Precision.HIGHEST) + params["b1"][None, :, None, None, None]
    w2eq = jnp.flip(params["w2"], axis=(2, 3, 4)).transpose(1, 0, 2, 3, 4)
    ref2 = jax.lax.conv_general_dilated(
        ref1, w2eq, (1, 1, 1), [(1, 1), (1, 2), (1, 2)],
        lhs_dilation=(2, 2, 2), dimension_numbers=dn,
        precision=jax.lax.Precision.HIGHEST) + params["b2"][None, :, None, None, None]
    if not np.allclose(np.asarray(out), np.asarray(ref2), rtol=2e-4, atol=2e-4):
        raise AssertionError("pallas output does not match lax reference")
    print("KERNEL_OK")
</pallas_src>

<mosaic_0001>
module attributes {stable_mosaic.version = 11 : i64} {
  func.func @probe(%arg0: memref<8x128xf32, #tpu.memory_space<vmem>>, %arg1: memref<8x128xf32, #tpu.memory_space<vmem>>) attributes {dimension_semantics = [], scalar_prefetch = 0 : i64, scratch_operands = 0 : i64, tpu.core_type = #tpu.core_type<tc>} {
    %c0 = arith.constant 0 : index
    %c0_0 = arith.constant 0 : index
    %0 = vector.load %arg0[%c0, %c0_0] : memref<8x128xf32, #tpu.memory_space<vmem>>, vector<8x128xf32>
    %c1_i32 = arith.constant 1 : i32
    %1 = tpu.dynamic_rotate %0 by %c1_i32 dim 1 : vector<8x128xf32>, i32 -> vector<8x128xf32>
    %c0_1 = arith.constant 0 : index
    %c0_2 = arith.constant 0 : index
    %2 = vector.load %arg1[%c0_1, %c0_2] : memref<8x128xf32, #tpu.memory_space<vmem>>, vector<8x128xf32>
    tpu.vector_store %arg1[%c0_1, %c0_2], %1 {strides = array<i32>} : memref<8x128xf32, #tpu.memory_space<vmem>>, vector<8x128xf32>,
    return
  }
}

</mosaic_0001>

<llo_original>
// kernel: tpu_custom_call.1
$region0: #{tpu_custom_call.1}
  #allocation0 [shape = 'u32[]', space=smem, size = 0x4, offset = 0x4, fixed_abs, tag = 'smem constant byte address 0x4 - core index']
  #allocation1 [shape = 'u32[72,128]{1,0:T(1,128)}', space=vmem, size = 0x9000, scoped, tag = 'internal scratch']
  %s0 = inlined_call_operand.hbm [shape: f32[8,128], index: 0, kind: input, shape index: {}]
  %s1 = inlined_call_operand.hbm [shape: f32[8,128], index: 1, kind: output, shape index: {}]
  %s2 = sld [smem:[#allocation0]]
  $region18: #{tpu_custom_call.1} parent=0
    _
  %s4 = ssub.s32 1, %s2
  %s5 = scalar_select 0, %s4, %s2
  $region1: #{tpu_custom_call.1} parent=0
    #allocation2 [shape = 'u8[4096]{0}', space=vmem, size = 0x1000, scoped, tag = 'input window, operand 0, single buffered']
    #allocation3 [shape = 's32[1]{0}', space=sflag, size = 0x4, scoped, tag = 'scoped memory for tpu_custom_call.1']
    #allocation4 [shape = 's32[1]{0}', space=sflag, size = 0x4, scoped, tag = 'scoped memory for tpu_custom_call.1']
    #allocation5 [shape = 'u8[4096]{0}', space=vmem, size = 0x1000, scoped, tag = 'output window, operand 0, single buffered']
    %6 = vsyncpa [#allocation3], 0
    %7 = vsyncpa [#allocation4], 0
    // Predicated region
    $region2: #{tpu_custom_call.1} parent=1 // pred_check
      _
    $region3: #{tpu_custom_call.1} parent=1 // pred_check_branch
      %9 = sbr.rel (0) target = $region5
    $region4: #{tpu_custom_call.1} parent=1 // pred_region
      %11 = vsyncadd [#allocation3], 0
      %s13 = sshll.u32 %s0, 4
      %s14 = int_to_ptr.hbm [resolvable:$true] %s13
      %s15 = sshll.u32 [#allocation2], 4
      %s16 = int_to_ptr.vmem [resolvable:$true] %s15
      %18 = dma.hbm_to_vmem [thread:$0]  %s14, 128, %s16, [#allocation3]
    $region5: #{tpu_custom_call.1} parent=1 // pred_fallthru
      _
    // Predicated region
    $region6: #{tpu_custom_call.1} parent=1 // pred_check
      _
    $region7: #{tpu_custom_call.1} parent=1 // pred_check_branch
      %20 = sbr.rel (0) target = $region9
    $region8: #{tpu_custom_call.1} parent=1 // pred_region
      %22 = dma.done [#allocation3], 128
    $region9: #{tpu_custom_call.1} parent=1 // pred_fallthru
      _
    %v23 = vld [vmem:[#allocation2] sm:$0xff]
    %24 = vrot.lane.b32.xlu0 %v23, 1
    %v25 = vpop.permute.xlu0 %24
    %26 = vst [vmem:[#allocation5] sm:$0xff] %v25
    // Predicated region
    $region10: #{tpu_custom_call.1} parent=1 // pred_check
      _
    $region11: #{tpu_custom_call.1} parent=1 // pred_check_branch
      %28 = sbr.rel (0) target = $region13
    $region12: #{tpu_custom_call.1} parent=1 // pred_region
      %30 = vsyncadd [#allocation4], 0
      %s32 = sshll.u32 [#allocation5], 4
      %s33 = int_to_ptr.vmem [resolvable:$true] %s32
      %s34 = sshll.u32 %s1, 4
      %s35 = int_to_ptr.hbm [resolvable:$true] %s34
      %37 = dma.vmem_to_hbm [thread:$0]  %s33, 128, %s35, [#allocation4]
    $region13: #{tpu_custom_call.1} parent=1 // pred_fallthru
      _
    // Predicated region
    $region14: #{tpu_custom_call.1} parent=1 // pred_check
      _
    $region15: #{tpu_custom_call.1} parent=1 // pred_check_branch
      %39 = sbr.rel (0) target = $region17
    $region16: #{tpu_custom_call.1} parent=1 // pred_region
      %41 = dma.done [#allocation4], 128
    $region17: #{tpu_custom_call.1} parent=1 // pred_fallthru
      _
    %42 = vsyncpa [#allocation3], 1
    %43 = vsyncpa [#allocation4], 1

</llo_original>
